<compile_context>
chip_gen: v7x
topology: tpu7x:2x2x1
jax: 0.10.0
libtpu: 0.0.40
codegen_flags: <defaults>
</compile_context>

<pallas_src>
import functools
import math

import numpy as np
import jax
import jax.numpy as jnp
from jax import lax
from jax.experimental import pallas as pl
from jax.experimental.pallas import tpu as pltpu

# Keep f32 matmuls at full precision inside and outside the kernels so the
# pure-JAX reference matches tightly.
jax.config.update("jax_default_matmul_precision", "highest")


# ---------------------------------------------------------------------------
# TransformerEmbedding: DMA row-gather from HBM + positional-encoding add
# ---------------------------------------------------------------------------
def _embed_kernel(ids_ref, tab_hbm, pe_ref, out_ref, rows_ref, sem_ref, *, ts, s_pad):
    b = pl.program_id(0)
    st = pl.program_id(1)
    base = b * s_pad + st * ts

    # Gather one embedding row per token of this tile.  All DMAs share ONE
    # semaphore; issue is fully unrolled (static Python loop) so the LLO
    # scheduler can pack descriptor issues; then wait for all of them.
    for i in range(ts):
        tok = ids_ref[base + i]                      # scalar id from SMEM
        pltpu.make_async_copy(tab_hbm.at[tok], rows_ref.at[i], sem_ref).start()
    for i in range(ts):
        # same-size copies on the shared semaphore -> one wait per copy
        pltpu.make_async_copy(tab_hbm.at[0], rows_ref.at[i], sem_ref).wait()

    # tok_emb + pos_emb fused into the same store.
    out_ref[0] = rows_ref[...] + pe_ref[...]
    # TODO(synk): nn.Dropout implemented as eval-mode identity; training mode
    # would fuse pltpu.prng_seed + pltpu.prng_random_bits masking here.


def transformer_embedding(ids, table, pe_full):
    B, S = ids.shape
    V, D = table.shape
    ts = min(128, S)                                 # token-tile rows per step
    s_pad = ((S + ts - 1) // ts) * ts                # cdiv-based padding, not gcd

    pe = pe_full[:S, :]                              # PositionalEncoding.forward slice
    if s_pad != S:
        ids = jnp.pad(ids, ((0, 0), (0, s_pad - S)))
        pe = jnp.pad(pe, ((0, s_pad - S), (0, 0)))
    ids_flat = ids.reshape(-1).astype(jnp.int32)     # 1-D -> no SMEM 2-D padding

    kernel = functools.partial(_embed_kernel, ts=ts, s_pad=s_pad)
    out = pl.pallas_call(
        kernel,
        out_shape=jax.ShapeDtypeStruct((B, s_pad, D), jnp.float32),
        grid_spec=pltpu.PrefetchScalarGridSpec(
            num_scalar_prefetch=1,                   # ids -> SMEM
            grid=(B, s_pad // ts),
            in_specs=[
                pl.BlockSpec(memory_space=pl.ANY),                    # table stays in HBM
                pl.BlockSpec((ts, D), lambda b, s, ids: (s, 0)),      # PE tile per step
            ],
            out_specs=pl.BlockSpec((1, ts, D), lambda b, s, ids: (b, s, 0)),
            scratch_shapes=[
                pltpu.VMEM((ts, D), table.dtype),    # gathered rows
                pltpu.SemaphoreType.DMA(()),         # ONE shared DMA semaphore
            ],
        ),
        compiler_params=pltpu.CompilerParams(
            dimension_semantics=("parallel", "parallel"),
            vmem_limit_bytes=32 * 1024 * 1024),
    )(ids_flat, table, pe)
    return out[:, :S, :] if s_pad != S else out


# ---------------------------------------------------------------------------
# Fused EncoderLayer kernel (MHA + LN + FFN + LN), grid over batch
# ---------------------------------------------------------------------------
def _encoder_layer_kernel(x_ref, km_ref,
                          wqkv_ref, bqkv_ref, wc_ref, bc_ref,
                          g1_ref, be1_ref, w1_ref, bf1_ref, w2_ref, bf2_ref,
                          g2_ref, be2_ref, out_ref, concat_ref, *, n_head, eps):
    x = x_ref[0]                                      # (L, D)
    L, D = x.shape
    dh = D // n_head
    scale = 1.0 / math.sqrt(dh)

    # One fused (L,D)@(D,3D) MXU matmul for Q,K,V.
    qkv = jnp.dot(x, wqkv_ref[...], preferred_element_type=jnp.float32) + bqkv_ref[...]
    q = qkv[:, :D] * scale                            # fold 1/sqrt(dh) into q once
    k = qkv[:, D:2 * D]
    v = qkv[:, 2 * D:]

    # Key-padding bias: compare + broadcast done ONCE, hoisted out of the head
    # loop.  Additive -1e4 is numerically identical to masked_fill(-10000)
    # after the max-subtracted softmax (exp underflows to 0 either way).
    kbias = jnp.broadcast_to(
        jnp.where(km_ref[0] == 0, jnp.float32(-10000.0), jnp.float32(0.0)), (L, L))

    for h in range(n_head):                           # static unroll over heads
        sl = slice(h * dh, (h + 1) * dh)
        qh, kh, vh = q[:, sl], k[:, sl], v[:, sl]
        score = lax.dot_general(qh, kh, (((1,), (1,)), ((), ())),
                                preferred_element_type=jnp.float32)
        score = score + kbias
        m = jnp.max(score, axis=-1, keepdims=True)
        e = jnp.exp(score - m)
        l = jnp.sum(e, axis=-1, keepdims=True)
        oh = jnp.dot(e, vh, preferred_element_type=jnp.float32)      # (L, dh)
        # fold softmax normalization after the p@v matmul (EUP reciprocal,
        # L*dh multiplies instead of L*L divides)
        concat_ref[:, sl] = oh * pl.reciprocal(l, approx=False)

    # Head concat + w_concat as ONE full-K (L,D)@(D,D) MXU matmul.
    attn_out = jnp.dot(concat_ref[...], wc_ref[...],
                       preferred_element_type=jnp.float32) + bc_ref[...]
    # TODO(synk): dropout1 / ffn dropout / dropout2 are eval-mode identity.

    # residual + LayerNorm1 (biased variance, eps=1e-12), rsqrt on EUP
    h1 = attn_out + x
    mu1 = jnp.mean(h1, axis=-1, keepdims=True)
    var1 = jnp.mean((h1 - mu1) ** 2, axis=-1, keepdims=True)
    h1 = g1_ref[...] * ((h1 - mu1) * lax.rsqrt(var1 + eps)) + be1_ref[...]

    # PositionwiseFeedForward: linear1 -> ReLU -> linear2
    f = jnp.dot(h1, w1_ref[...], preferred_element_type=jnp.float32) + bf1_ref[...]
    f = jnp.maximum(f, 0.0)
    f = jnp.dot(f, w2_ref[...], preferred_element_type=jnp.float32) + bf2_ref[...]

    # residual + LayerNorm2
    h2 = f + h1
    mu2 = jnp.mean(h2, axis=-1, keepdims=True)
    var2 = jnp.mean((h2 - mu2) ** 2, axis=-1, keepdims=True)
    out_ref[0] = g2_ref[...] * ((h2 - mu2) * lax.rsqrt(var2 + eps)) + be2_ref[...]


def encoder_layer(x, key_mask3, p, *, n_head, eps=1e-12):
    B, L, D = x.shape
    # Host-side fusion of the Q/K/V projection weights -> one MXU matmul.
    wqkv = jnp.concatenate([p["wq"], p["wk"], p["wv"]], axis=1)   # (D, 3D)
    bqkv = jnp.concatenate([p["bq"], p["bk"], p["bv"]], axis=1)   # (1, 3D)
    weights = [wqkv, bqkv, p["wc"], p["bc"], p["g1"], p["be1"],
               p["w1"], p["bf1"], p["w2"], p["bf2"], p["g2"], p["be2"]]

    def full_spec(arr):
        # Grid-invariant weights.  (pipeline_mode=pl.Buffered(1) would single-
        # buffer these and halve their VMEM cost at realistic D/F.)
        return pl.BlockSpec(arr.shape, lambda b: (0, 0))

    kernel = functools.partial(_encoder_layer_kernel, n_head=n_head, eps=eps)
    return pl.pallas_call(
        kernel,
        out_shape=jax.ShapeDtypeStruct((B, L, D), jnp.float32),
        grid=(B,),
        in_specs=[pl.BlockSpec((1, L, D), lambda b: (b, 0, 0)),
                  pl.BlockSpec((1, 1, L), lambda b: (b, 0, 0))]     # key mask, not (B,L,L)
                 + [full_spec(w) for w in weights],
        out_specs=pl.BlockSpec((1, L, D), lambda b: (b, 0, 0)),
        scratch_shapes=[pltpu.VMEM((L, D), jnp.float32)],           # head-concat buffer
        compiler_params=pltpu.CompilerParams(
            dimension_semantics=("parallel",),
            vmem_limit_bytes=32 * 1024 * 1024),
    )(x, key_mask3, *weights)


def encoder_forward(ids, key_mask, table, pe_full, layer_params, *, n_head, eps=1e-12):
    x = transformer_embedding(ids, table, pe_full)
    km3 = key_mask.astype(jnp.int32)[:, None, :]      # (B, 1, S) key-padding mask
    for p in layer_params:
        x = encoder_layer(x, km3, p, n_head=n_head, eps=eps)
    return x


# ---------------------------------------------------------------------------
# Parameter / constant construction and pure-JAX reference
# ---------------------------------------------------------------------------
def sinusoidal_encoding(max_len, d_model):
    pos = np.arange(max_len, dtype=np.float32)[:, None]
    _2i = np.arange(0, d_model, 2, dtype=np.float32)
    div = np.power(10000.0, _2i / d_model)
    enc = np.zeros((max_len, d_model), dtype=np.float32)
    enc[:, 0::2] = np.sin(pos / div)
    enc[:, 1::2] = np.cos(pos / div)
    return jnp.asarray(enc)


def init_layer_params(key, d_model, ffn_hidden):
    ks = jax.random.split(key, 6)

    def lin(k, fan_in, fan_out):
        bound = 1.0 / math.sqrt(fan_in)
        kw, kb = jax.random.split(k)
        w = jax.random.uniform(kw, (fan_in, fan_out), jnp.float32, -bound, bound)
        b = jax.random.uniform(kb, (1, fan_out), jnp.float32, -bound, bound)
        return w, b

    wq, bq = lin(ks[0], d_model, d_model)
    wk, bk = lin(ks[1], d_model, d_model)
    wv, bv = lin(ks[2], d_model, d_model)
    wc, bc = lin(ks[3], d_model, d_model)
    w1, bf1 = lin(ks[4], d_model, ffn_hidden)
    w2, bf2 = lin(ks[5], ffn_hidden, d_model)
    ones = jnp.ones((1, d_model), jnp.float32)
    zeros = jnp.zeros((1, d_model), jnp.float32)
    return dict(wq=wq, bq=bq, wk=wk, bk=bk, wv=wv, bv=bv, wc=wc, bc=bc,
                g1=ones, be1=zeros, w1=w1, bf1=bf1, w2=w2, bf2=bf2,
                g2=ones, be2=zeros)


def _layer_norm_ref(x, g, b, eps):
    mu = x.mean(-1, keepdims=True)
    var = ((x - mu) ** 2).mean(-1, keepdims=True)
    return g * (x - mu) / jnp.sqrt(var + eps) + b


def encoder_layer_ref(x, key_mask, p, n_head, eps=1e-12):
    B, L, D = x.shape
    dh = D // n_head
    q = x @ p["wq"] + p["bq"]
    k = x @ p["wk"] + p["bk"]
    v = x @ p["wv"] + p["bv"]

    def split(t):
        return t.reshape(B, L, n_head, dh).transpose(0, 2, 1, 3)

    qh, kh, vh = split(q), split(k), split(v)
    score = jnp.einsum("bhld,bhmd->bhlm", qh, kh) / math.sqrt(dh)
    # masked_fill with the broadcastable (B,1,1,L) key-padding mask
    score = jnp.where(key_mask[:, None, None, :] == 0, -10000.0, score)
    attn = jax.nn.softmax(score, axis=-1)
    o = jnp.einsum("bhlm,bhmd->bhld", attn, vh)
    o = o.transpose(0, 2, 1, 3).reshape(B, L, D)
    o = o @ p["wc"] + p["bc"]
    h1 = _layer_norm_ref(o + x, p["g1"], p["be1"], eps)
    f = jnp.maximum(h1 @ p["w1"] + p["bf1"], 0.0) @ p["w2"] + p["bf2"]
    return _layer_norm_ref(f + h1, p["g2"], p["be2"], eps)


if __name__ == "__main__":
    vocab_size, d_model, max_len = 64, 32, 16
    ffn_hidden, n_head, n_layers = 64, 4, 2
    batch, seq_len = 2, 8
    eps = 1e-12
    drop_prob = 0.1  # eval mode -> identity

    key = jax.random.PRNGKey(0)
    k_tab, k_ids, k_layers = jax.random.split(key, 3)

    # nn.Embedding init: N(0,1), padding_idx=1 row zeroed
    table = jax.random.normal(k_tab, (vocab_size, d_model), dtype=jnp.float32)
    table = table.at[1].set(0.0)

    ids = jax.random.randint(k_ids, (batch, seq_len), 0, vocab_size, dtype=jnp.int32)
    pe_full = sinusoidal_encoding(max_len, d_model)

    # key-padding mask (how the source repo builds src_mask):
    # batch 0 keeps all tokens, batch 1 keeps seq_len-2
    valid = jnp.array([seq_len, seq_len - 2], dtype=jnp.int32)
    key_mask = (jnp.arange(seq_len)[None, :] < valid[:, None]).astype(jnp.int32)  # (B, S)

    layer_params = [init_layer_params(k, d_model, ffn_hidden)
                    for k in jax.random.split(k_layers, n_layers)]

    out = encoder_forward(ids, key_mask, table, pe_full, layer_params,
                          n_head=n_head, eps=eps)
    out = jax.block_until_ready(out)

    # pure-JAX reference (embedding lookup + PE, then encoder layers)
    x_ref = table[ids] + pe_full[:seq_len][None]
    for p in layer_params:
        x_ref = encoder_layer_ref(x_ref, key_mask, p, n_head, eps)

    assert out.shape == (batch, seq_len, d_model)
    np.testing.assert_allclose(np.asarray(out), np.asarray(x_ref), rtol=1e-4, atol=1e-4)
    print("KERNEL_OK")
</pallas_src>

<mosaic_0001>
module attributes {stable_mosaic.version = 11 : i64} {
  func.func @_embed_kernel(%arg0: i32, %arg1: i32, %arg2: memref<16xi32, #tpu.memory_space<smem>>, %arg3: memref<64x32xf32, #tpu.memory_space<any>>, %arg4: memref<8x32xf32, #tpu.memory_space<vmem>>, %arg5: memref<1x8x32xf32, #tpu.memory_space<vmem>>, %arg6: memref<8x32xf32, #tpu.memory_space<vmem>>, %arg7: memref<!tpu.dma_semaphore, #tpu.memory_space<semaphore_mem>>) attributes {dimension_semantics = [#tpu.dimension_semantics<parallel>, #tpu.dimension_semantics<parallel>], iteration_bounds = array<i64: 2, 1>, scalar_prefetch = 1 : i64, scratch_operands = 2 : i64, tpu.core_type = #tpu.core_type<tc>, window_params = [{}, {transform_indices = @transform_1, window_bounds = array<i64: 8, 32>}, {transform_indices = @transform_2, window_bounds = array<i64: 1, 8, 32>}]} {
    %c8_i32 = arith.constant 8 : i32
    %0 = arith.muli %arg0, %c8_i32 : i32
    %c8_i32_0 = arith.constant 8 : i32
    %1 = arith.muli %arg1, %c8_i32_0 : i32
    %2 = arith.addi %0, %1 : i32
    %c0_i32 = arith.constant 0 : i32
    %3 = arith.addi %2, %c0_i32 : i32
    %4 = arith.index_cast %3 : i32 to index
    %5 = memref.load %arg2[%4] : memref<16xi32, #tpu.memory_space<smem>>
    %c0_i32_1 = arith.constant 0 : i32
    %c0_i32_2 = arith.constant 0 : i32
    %6 = tpu.memref_slice %arg3[%5, %c0_i32_2] : memref<64x32xf32, #tpu.memory_space<any>> -> memref<1x32xf32, #tpu.memory_space<any>>
    %7 = tpu.memref_squeeze %6 : memref<1x32xf32, #tpu.memory_space<any>> -> memref<32xf32, #tpu.memory_space<any>>
    %c0_i32_3 = arith.constant 0 : i32
    %8 = tpu.memref_slice %arg6[%c0_i32_1, %c0_i32_3] : memref<8x32xf32, #tpu.memory_space<vmem>> -> memref<1x32xf32, #tpu.memory_space<vmem>>
    %9 = tpu.memref_squeeze %8 : memref<1x32xf32, #tpu.memory_space<vmem>> -> memref<32xf32, #tpu.memory_space<vmem>>
    tpu.enqueue_dma source(%7 : memref<32xf32, #tpu.memory_space<any>>) target(%9 : memref<32xf32, #tpu.memory_space<vmem>>) target_semaphore(%arg7 : memref<!tpu.dma_semaphore, #tpu.memory_space<semaphore_mem>>)
    %c1_i32 = arith.constant 1 : i32
    %10 = arith.addi %2, %c1_i32 : i32
    %11 = arith.index_cast %10 : i32 to index
    %12 = memref.load %arg2[%11] : memref<16xi32, #tpu.memory_space<smem>>
    %c1_i32_4 = arith.constant 1 : i32
    %c0_i32_5 = arith.constant 0 : i32
    %13 = tpu.memref_slice %arg3[%12, %c0_i32_5] : memref<64x32xf32, #tpu.memory_space<any>> -> memref<1x32xf32, #tpu.memory_space<any>>
    %14 = tpu.memref_squeeze %13 : memref<1x32xf32, #tpu.memory_space<any>> -> memref<32xf32, #tpu.memory_space<any>>
    %c0_i32_6 = arith.constant 0 : i32
    %15 = tpu.memref_slice %arg6[%c1_i32_4, %c0_i32_6] : memref<8x32xf32, #tpu.memory_space<vmem>> -> memref<1x32xf32, #tpu.memory_space<vmem>>
    %16 = tpu.memref_squeeze %15 : memref<1x32xf32, #tpu.memory_space<vmem>> -> memref<32xf32, #tpu.memory_space<vmem>>
    tpu.enqueue_dma source(%14 : memref<32xf32, #tpu.memory_space<any>>) target(%16 : memref<32xf32, #tpu.memory_space<vmem>>) target_semaphore(%arg7 : memref<!tpu.dma_semaphore, #tpu.memory_space<semaphore_mem>>)
    %c2_i32 = arith.constant 2 : i32
    %17 = arith.addi %2, %c2_i32 : i32
    %18 = arith.index_cast %17 : i32 to index
    %19 = memref.load %arg2[%18] : memref<16xi32, #tpu.memory_space<smem>>
    %c2_i32_7 = arith.constant 2 : i32
    %c0_i32_8 = arith.constant 0 : i32
    %20 = tpu.memref_slice %arg3[%19, %c0_i32_8] : memref<64x32xf32, #tpu.memory_space<any>> -> memref<1x32xf32, #tpu.memory_space<any>>
    %21 = tpu.memref_squeeze %20 : memref<1x32xf32, #tpu.memory_space<any>> -> memref<32xf32, #tpu.memory_space<any>>
    %c0_i32_9 = arith.constant 0 : i32
    %22 = tpu.memref_slice %arg6[%c2_i32_7, %c0_i32_9] : memref<8x32xf32, #tpu.memory_space<vmem>> -> memref<1x32xf32, #tpu.memory_space<vmem>>
    %23 = tpu.memref_squeeze %22 : memref<1x32xf32, #tpu.memory_space<vmem>> -> memref<32xf32, #tpu.memory_space<vmem>>
    tpu.enqueue_dma source(%21 : memref<32xf32, #tpu.memory_space<any>>) target(%23 : memref<32xf32, #tpu.memory_space<vmem>>) target_semaphore(%arg7 : memref<!tpu.dma_semaphore, #tpu.memory_space<semaphore_mem>>)
    %c3_i32 = arith.constant 3 : i32
    %24 = arith.addi %2, %c3_i32 : i32
    %25 = arith.index_cast %24 : i32 to index
    %26 = memref.load %arg2[%25] : memref<16xi32, #tpu.memory_space<smem>>
    %c3_i32_10 = arith.constant 3 : i32
    %c0_i32_11 = arith.constant 0 : i32
    %27 = tpu.memref_slice %arg3[%26, %c0_i32_11] : memref<64x32xf32, #tpu.memory_space<any>> -> memref<1x32xf32, #tpu.memory_space<any>>
    %28 = tpu.memref_squeeze %27 : memref<1x32xf32, #tpu.memory_space<any>> -> memref<32xf32, #tpu.memory_space<any>>
    %c0_i32_12 = arith.constant 0 : i32
    %29 = tpu.memref_slice %arg6[%c3_i32_10, %c0_i32_12] : memref<8x32xf32, #tpu.memory_space<vmem>> -> memref<1x32xf32, #tpu.memory_space<vmem>>
    %30 = tpu.memref_squeeze %29 : memref<1x32xf32, #tpu.memory_space<vmem>> -> memref<32xf32, #tpu.memory_space<vmem>>
    tpu.enqueue_dma source(%28 : memref<32xf32, #tpu.memory_space<any>>) target(%30 : memref<32xf32, #tpu.memory_space<vmem>>) target_semaphore(%arg7 : memref<!tpu.dma_semaphore, #tpu.memory_space<semaphore_mem>>)
    %c4_i32 = arith.constant 4 : i32
    %31 = arith.addi %2, %c4_i32 : i32
    %32 = arith.index_cast %31 : i32 to index
    %33 = memref.load %arg2[%32] : memref<16xi32, #tpu.memory_space<smem>>
    %c4_i32_13 = arith.constant 4 : i32
    %c0_i32_14 = arith.constant 0 : i32
    %34 = tpu.memref_slice %arg3[%33, %c0_i32_14] : memref<64x32xf32, #tpu.memory_space<any>> -> memref<1x32xf32, #tpu.memory_space<any>>
    %35 = tpu.memref_squeeze %34 : memref<1x32xf32, #tpu.memory_space<any>> -> memref<32xf32, #tpu.memory_space<any>>
    %c0_i32_15 = arith.constant 0 : i32
    %36 = tpu.memref_slice %arg6[%c4_i32_13, %c0_i32_15] : memref<8x32xf32, #tpu.memory_space<vmem>> -> memref<1x32xf32, #tpu.memory_space<vmem>>
    %37 = tpu.memref_squeeze %36 : memref<1x32xf32, #tpu.memory_space<vmem>> -> memref<32xf32, #tpu.memory_space<vmem>>
    tpu.enqueue_dma source(%35 : memref<32xf32, #tpu.memory_space<any>>) target(%37 : memref<32xf32, #tpu.memory_space<vmem>>) target_semaphore(%arg7 : memref<!tpu.dma_semaphore, #tpu.memory_space<semaphore_mem>>)
    %c5_i32 = arith.constant 5 : i32
    %38 = arith.addi %2, %c5_i32 : i32
    %39 = arith.index_cast %38 : i32 to index
    %40 = memref.load %arg2[%39] : memref<16xi32, #tpu.memory_space<smem>>
    %c5_i32_16 = arith.constant 5 : i32
    %c0_i32_17 = arith.constant 0 : i32
    %41 = tpu.memref_slice %arg3[%40, %c0_i32_17] : memref<64x32xf32, #tpu.memory_space<any>> -> memref<1x32xf32, #tpu.memory_space<any>>
    %42 = tpu.memref_squeeze %41 : memref<1x32xf32, #tpu.memory_space<any>> -> memref<32xf32, #tpu.memory_space<any>>
    %c0_i32_18 = arith.constant 0 : i32
    %43 = tpu.memref_slice %arg6[%c5_i32_16, %c0_i32_18] : memref<8x32xf32, #tpu.memory_space<vmem>> -> memref<1x32xf32, #tpu.memory_space<vmem>>
    %44 = tpu.memref_squeeze %43 : memref<1x32xf32, #tpu.memory_space<vmem>> -> memref<32xf32, #tpu.memory_space<vmem>>
    tpu.enqueue_dma source(%42 : memref<32xf32, #tpu.memory_space<any>>) target(%44 : memref<32xf32, #tpu.memory_space<vmem>>) target_semaphore(%arg7 : memref<!tpu.dma_semaphore, #tpu.memory_space<semaphore_mem>>)
    %c6_i32 = arith.constant 6 : i32
    %45 = arith.addi %2, %c6_i32 : i32
    %46 = arith.index_cast %45 : i32 to index
    %47 = memref.load %arg2[%46] : memref<16xi32, #tpu.memory_space<smem>>
    %c6_i32_19 = arith.constant 6 : i32
    %c0_i32_20 = arith.constant 0 : i32
    %48 = tpu.memref_slice %arg3[%47, %c0_i32_20] : memref<64x32xf32, #tpu.memory_space<any>> -> memref<1x32xf32, #tpu.memory_space<any>>
    %49 = tpu.memref_squeeze %48 : memref<1x32xf32, #tpu.memory_space<any>> -> memref<32xf32, #tpu.memory_space<any>>
    %c0_i32_21 = arith.constant 0 : i32
    %50 = tpu.memref_slice %arg6[%c6_i32_19, %c0_i32_21] : memref<8x32xf32, #tpu.memory_space<vmem>> -> memref<1x32xf32, #tpu.memory_space<vmem>>
    %51 = tpu.memref_squeeze %50 : memref<1x32xf32, #tpu.memory_space<vmem>> -> memref<32xf32, #tpu.memory_space<vmem>>
    tpu.enqueue_dma source(%49 : memref<32xf32, #tpu.memory_space<any>>) target(%51 : memref<32xf32, #tpu.memory_space<vmem>>) target_semaphore(%arg7 : memref<!tpu.dma_semaphore, #tpu.memory_space<semaphore_mem>>)
    %c7_i32 = arith.constant 7 : i32
    %52 = arith.addi %2, %c7_i32 : i32
    %53 = arith.index_cast %52 : i32 to index
    %54 = memref.load %arg2[%53] : memref<16xi32, #tpu.memory_space<smem>>
    %c7_i32_22 = arith.constant 7 : i32
    %c0_i32_23 = arith.constant 0 : i32
    %55 = tpu.memref_slice %arg3[%54, %c0_i32_23] : memref<64x32xf32, #tpu.memory_space<any>> -> memref<1x32xf32, #tpu.memory_space<any>>
    %56 = tpu.memref_squeeze %55 : memref<1x32xf32, #tpu.memory_space<any>> -> memref<32xf32, #tpu.memory_space<any>>
    %c0_i32_24 = arith.constant 0 : i32
    %57 = tpu.memref_slice %arg6[%c7_i32_22, %c0_i32_24] : memref<8x32xf32, #tpu.memory_space<vmem>> -> memref<1x32xf32, #tpu.memory_space<vmem>>
    %58 = tpu.memref_squeeze %57 : memref<1x32xf32, #tpu.memory_space<vmem>> -> memref<32xf32, #tpu.memory_space<vmem>>
    tpu.enqueue_dma source(%56 : memref<32xf32, #tpu.memory_space<any>>) target(%58 : memref<32xf32, #tpu.memory_space<vmem>>) target_semaphore(%arg7 : memref<!tpu.dma_semaphore, #tpu.memory_space<semaphore_mem>>)
    %c0_i32_25 = arith.constant 0 : i32
    %c0_i32_26 = arith.constant 0 : i32
    %c0_i32_27 = arith.constant 0 : i32
    %59 = tpu.memref_slice %arg3[%c0_i32_25, %c0_i32_27] : memref<64x32xf32, #tpu.memory_space<any>> -> memref<1x32xf32, #tpu.memory_space<any>>
    %60 = tpu.memref_squeeze %59 : memref<1x32xf32, #tpu.memory_space<any>> -> memref<32xf32, #tpu.memory_space<any>>
    %c0_i32_28 = arith.constant 0 : i32
    %61 = tpu.memref_slice %arg6[%c0_i32_26, %c0_i32_28] : memref<8x32xf32, #tpu.memory_space<vmem>> -> memref<1x32xf32, #tpu.memory_space<vmem>>
    %62 = tpu.memref_squeeze %61 : memref<1x32xf32, #tpu.memory_space<vmem>> -> memref<32xf32, #tpu.memory_space<vmem>>
    tpu.wait_dma2 semaphore(%arg7 : memref<!tpu.dma_semaphore, #tpu.memory_space<semaphore_mem>>) src(%60 : memref<32xf32, #tpu.memory_space<any>>) dst(%62 : memref<32xf32, #tpu.memory_space<vmem>>)
    %c0_i32_29 = arith.constant 0 : i32
    %c1_i32_30 = arith.constant 1 : i32
    %c0_i32_31 = arith.constant 0 : i32
    %63 = tpu.memref_slice %arg3[%c0_i32_29, %c0_i32_31] : memref<64x32xf32, #tpu.memory_space<any>> -> memref<1x32xf32, #tpu.memory_space<any>>
    %64 = tpu.memref_squeeze %63 : memref<1x32xf32, #tpu.memory_space<any>> -> memref<32xf32, #tpu.memory_space<any>>
    %c0_i32_32 = arith.constant 0 : i32
    %65 = tpu.memref_slice %arg6[%c1_i32_30, %c0_i32_32] : memref<8x32xf32, #tpu.memory_space<vmem>> -> memref<1x32xf32, #tpu.memory_space<vmem>>
    %66 = tpu.memref_squeeze %65 : memref<1x32xf32, #tpu.memory_space<vmem>> -> memref<32xf32, #tpu.memory_space<vmem>>
    tpu.wait_dma2 semaphore(%arg7 : memref<!tpu.dma_semaphore, #tpu.memory_space<semaphore_mem>>) src(%64 : memref<32xf32, #tpu.memory_space<any>>) dst(%66 : memref<32xf32, #tpu.memory_space<vmem>>)
    %c0_i32_33 = arith.constant 0 : i32
    %c2_i32_34 = arith.constant 2 : i32
    %c0_i32_35 = arith.constant 0 : i32
    %67 = tpu.memref_slice %arg3[%c0_i32_33, %c0_i32_35] : memref<64x32xf32, #tpu.memory_space<any>> -> memref<1x32xf32, #tpu.memory_space<any>>
    %68 = tpu.memref_squeeze %67 : memref<1x32xf32, #tpu.memory_space<any>> -> memref<32xf32, #tpu.memory_space<any>>
    %c0_i32_36 = arith.constant 0 : i32
    %69 = tpu.memref_slice %arg6[%c2_i32_34, %c0_i32_36] : memref<8x32xf32, #tpu.memory_space<vmem>> -> memref<1x32xf32, #tpu.memory_space<vmem>>
    %70 = tpu.memref_squeeze %69 : memref<1x32xf32, #tpu.memory_space<vmem>> -> memref<32xf32, #tpu.memory_space<vmem>>
    tpu.wait_dma2 semaphore(%arg7 : memref<!tpu.dma_semaphore, #tpu.memory_space<semaphore_mem>>) src(%68 : memref<32xf32, #tpu.memory_space<any>>) dst(%70 : memref<32xf32, #tpu.memory_space<vmem>>)
    %c0_i32_37 = arith.constant 0 : i32
    %c3_i32_38 = arith.constant 3 : i32
    %c0_i32_39 = arith.constant 0 : i32
    %71 = tpu.memref_slice %arg3[%c0_i32_37, %c0_i32_39] : memref<64x32xf32, #tpu.memory_space<any>> -> memref<1x32xf32, #tpu.memory_space<any>>
    %72 = tpu.memref_squeeze %71 : memref<1x32xf32, #tpu.memory_space<any>> -> memref<32xf32, #tpu.memory_space<any>>
    %c0_i32_40 = arith.constant 0 : i32
    %73 = tpu.memref_slice %arg6[%c3_i32_38, %c0_i32_40] : memref<8x32xf32, #tpu.memory_space<vmem>> -> memref<1x32xf32, #tpu.memory_space<vmem>>
    %74 = tpu.memref_squeeze %73 : memref<1x32xf32, #tpu.memory_space<vmem>> -> memref<32xf32, #tpu.memory_space<vmem>>
    tpu.wait_dma2 semaphore(%arg7 : memref<!tpu.dma_semaphore, #tpu.memory_space<semaphore_mem>>) src(%72 : memref<32xf32, #tpu.memory_space<any>>) dst(%74 : memref<32xf32, #tpu.memory_space<vmem>>)
    %c0_i32_41 = arith.constant 0 : i32
    %c4_i32_42 = arith.constant 4 : i32
    %c0_i32_43 = arith.constant 0 : i32
    %75 = tpu.memref_slice %arg3[%c0_i32_41, %c0_i32_43] : memref<64x32xf32, #tpu.memory_space<any>> -> memref<1x32xf32, #tpu.memory_space<any>>
    %76 = tpu.memref_squeeze %75 : memref<1x32xf32, #tpu.memory_space<any>> -> memref<32xf32, #tpu.memory_space<any>>
    %c0_i32_44 = arith.constant 0 : i32
    %77 = tpu.memref_slice %arg6[%c4_i32_42, %c0_i32_44] : memref<8x32xf32, #tpu.memory_space<vmem>> -> memref<1x32xf32, #tpu.memory_space<vmem>>
    %78 = tpu.memref_squeeze %77 : memref<1x32xf32, #tpu.memory_space<vmem>> -> memref<32xf32, #tpu.memory_space<vmem>>
    tpu.wait_dma2 semaphore(%arg7 : memref<!tpu.dma_semaphore, #tpu.memory_space<semaphore_mem>>) src(%76 : memref<32xf32, #tpu.memory_space<any>>) dst(%78 : memref<32xf32, #tpu.memory_space<vmem>>)
    %c0_i32_45 = arith.constant 0 : i32
    %c5_i32_46 = arith.constant 5 : i32
    %c0_i32_47 = arith.constant 0 : i32
    %79 = tpu.memref_slice %arg3[%c0_i32_45, %c0_i32_47] : memref<64x32xf32, #tpu.memory_space<any>> -> memref<1x32xf32, #tpu.memory_space<any>>
    %80 = tpu.memref_squeeze %79 : memref<1x32xf32, #tpu.memory_space<any>> -> memref<32xf32, #tpu.memory_space<any>>
    %c0_i32_48 = arith.constant 0 : i32
    %81 = tpu.memref_slice %arg6[%c5_i32_46, %c0_i32_48] : memref<8x32xf32, #tpu.memory_space<vmem>> -> memref<1x32xf32, #tpu.memory_space<vmem>>
    %82 = tpu.memref_squeeze %81 : memref<1x32xf32, #tpu.memory_space<vmem>> -> memref<32xf32, #tpu.memory_space<vmem>>
    tpu.wait_dma2 semaphore(%arg7 : memref<!tpu.dma_semaphore, #tpu.memory_space<semaphore_mem>>) src(%80 : memref<32xf32, #tpu.memory_space<any>>) dst(%82 : memref<32xf32, #tpu.memory_space<vmem>>)
    %c0_i32_49 = arith.constant 0 : i32
    %c6_i32_50 = arith.constant 6 : i32
    %c0_i32_51 = arith.constant 0 : i32
    %83 = tpu.memref_slice %arg3[%c0_i32_49, %c0_i32_51] : memref<64x32xf32, #tpu.memory_space<any>> -> memref<1x32xf32, #tpu.memory_space<any>>
    %84 = tpu.memref_squeeze %83 : memref<1x32xf32, #tpu.memory_space<any>> -> memref<32xf32, #tpu.memory_space<any>>
    %c0_i32_52 = arith.constant 0 : i32
    %85 = tpu.memref_slice %arg6[%c6_i32_50, %c0_i32_52] : memref<8x32xf32, #tpu.memory_space<vmem>> -> memref<1x32xf32, #tpu.memory_space<vmem>>
    %86 = tpu.memref_squeeze %85 : memref<1x32xf32, #tpu.memory_space<vmem>> -> memref<32xf32, #tpu.memory_space<vmem>>
    tpu.wait_dma2 semaphore(%arg7 : memref<!tpu.dma_semaphore, #tpu.memory_space<semaphore_mem>>) src(%84 : memref<32xf32, #tpu.memory_space<any>>) dst(%86 : memref<32xf32, #tpu.memory_space<vmem>>)
    %c0_i32_53 = arith.constant 0 : i32
    %c7_i32_54 = arith.constant 7 : i32
    %c0_i32_55 = arith.constant 0 : i32
    %87 = tpu.memref_slice %arg3[%c0_i32_53, %c0_i32_55] : memref<64x32xf32, #tpu.memory_space<any>> -> memref<1x32xf32, #tpu.memory_space<any>>
    %88 = tpu.memref_squeeze %87 : memref<1x32xf32, #tpu.memory_space<any>> -> memref<32xf32, #tpu.memory_space<any>>
    %c0_i32_56 = arith.constant 0 : i32
    %89 = tpu.memref_slice %arg6[%c7_i32_54, %c0_i32_56] : memref<8x32xf32, #tpu.memory_space<vmem>> -> memref<1x32xf32, #tpu.memory_space<vmem>>
    %90 = tpu.memref_squeeze %89 : memref<1x32xf32, #tpu.memory_space<vmem>> -> memref<32xf32, #tpu.memory_space<vmem>>
    tpu.wait_dma2 semaphore(%arg7 : memref<!tpu.dma_semaphore, #tpu.memory_space<semaphore_mem>>) src(%88 : memref<32xf32, #tpu.memory_space<any>>) dst(%90 : memref<32xf32, #tpu.memory_space<vmem>>)
    %c0 = arith.constant 0 : index
    %c0_57 = arith.constant 0 : index
    %91 = vector.load %arg6[%c0, %c0_57] : memref<8x32xf32, #tpu.memory_space<vmem>>, vector<8x32xf32>
    %c0_58 = arith.constant 0 : index
    %c0_59 = arith.constant 0 : index
    %92 = vector.load %arg4[%c0_58, %c0_59] : memref<8x32xf32, #tpu.memory_space<vmem>>, vector<8x32xf32>
    %93 = arith.addf %91, %92 : vector<8x32xf32>
    %c0_60 = arith.constant 0 : index
    %c0_61 = arith.constant 0 : index
    %c0_62 = arith.constant 0 : index
    %94 = vector.load %arg5[%c0_60, %c0_61, %c0_62] : memref<1x8x32xf32, #tpu.memory_space<vmem>>, vector<1x8x32xf32>
    %95 = vector.shape_cast %94 : vector<1x8x32xf32> to vector<8x32xf32>
    %96 = vector.shape_cast %93 : vector<8x32xf32> to vector<1x8x32xf32>
    tpu.vector_store %arg5[%c0_60, %c0_61, %c0_62], %96 {strides = array<i32>} : memref<1x8x32xf32, #tpu.memory_space<vmem>>, vector<1x8x32xf32>,
    return
  }
  func.func @transform_1(%arg0: i32, %arg1: i32, %arg2: memref<16xi32, #tpu.memory_space<smem>>) -> (i32, i32) {
    %c0_i32 = arith.constant 0 : i32
    %c0_i32_0 = arith.constant 0 : i32
    return %arg1, %c0_i32 : i32, i32
  }
  func.func @transform_2(%arg0: i32, %arg1: i32, %arg2: memref<16xi32, #tpu.memory_space<smem>>) -> (i32, i32, i32) {
    %c0_i32 = arith.constant 0 : i32
    %c0_i32_0 = arith.constant 0 : i32
    return %arg0, %arg1, %c0_i32 : i32, i32, i32
  }
}

</mosaic_0001>

<llo_original>
// kernel: tpu_custom_call.1
$region0: #{tpu_custom_call.1}
  #allocation0 [shape = 'u32[]', space=smem, size = 0x4, offset = 0x4, fixed_abs, tag = 'smem constant byte address 0x4 - core index']
  #allocation1 [shape = 'u32[144,128]{1,0:T(1,128)}', space=vmem, size = 0x12000, scoped, tag = 'internal scratch']
  #allocation2 [shape = 'f32[8,32]{1,0:T(8,128)}', space=vmem, size = 0x1000, scoped, tag = 'scratch operand']
  #allocation3 [shape = 's32[1]{0}', space=sflag, size = 0x4, scoped, tag = 'scratch operand']
  #allocation4 [shape = 's32[1]{0}', space=sflag, size = 0x4, scoped, tag = 'scoped memory for tpu_custom_call.1']
  #allocation5 [shape = 'u8[512]{0}', space=smem, size = 0x200, scoped, tag = 'prefetched SMEM operand 0']
  #allocation8 [shape = 's32[]', space=sflag, size = 0x4, offset = 0, fixed_abs, tag = 'sflag constant byte address 0x0 - dummy sync flag']
  #allocation9 [shape = 's32[]', space=sflag, size = 0x4, offset = 0, fixed_abs, tag = 'sflag constant byte address 0x0 - dummy sync flag']
  #allocation10 [shape = 's32[]', space=sflag, size = 0x4, offset = 0, fixed_abs, tag = 'sflag constant byte address 0x0 - dummy sync flag']
  #allocation11 [shape = 's32[]', space=sflag, size = 0x4, offset = 0, fixed_abs, tag = 'sflag constant byte address 0x0 - dummy sync flag']
  #allocation12 [shape = 's32[]', space=sflag, size = 0x4, offset = 0, fixed_abs, tag = 'sflag constant byte address 0x0 - dummy sync flag']
  #allocation13 [shape = 's32[]', space=sflag, size = 0x4, offset = 0, fixed_abs, tag = 'sflag constant byte address 0x0 - dummy sync flag']
  #allocation14 [shape = 's32[]', space=sflag, size = 0x4, offset = 0, fixed_abs, tag = 'sflag constant byte address 0x0 - dummy sync flag']
  #allocation15 [shape = 's32[]', space=sflag, size = 0x4, offset = 0, fixed_abs, tag = 'sflag constant byte address 0x0 - dummy sync flag']
  %s0 = inlined_call_operand.vmem [shape: s32[16], index: 0, kind: input, shape index: {}]
  %s1 = inlined_call_operand.vmem [shape: f32[64,32], index: 1, kind: input, shape index: {}]
  %s2 = inlined_call_operand.vmem [shape: f32[8,32], index: 2, kind: input, shape index: {}]
  %s3 = inlined_call_operand.hbm [shape: f32[2,8,32], index: 3, kind: output, shape index: {}]
  %s4 = sld [smem:[#allocation0]]
  $region277: #{tpu_custom_call.1} parent=0
    _
  %s6 = ssub.s32 1, %s4
  %s7 = scalar_select 0, %s6, %s4
  %s8 = sshll.u32 %s0, 4
  %s9 = int_to_ptr.vmem [resolvable:$true] %s8
  %11 = dma.vmem_to_smem %s9, 16, [#allocation5], [#allocation4]
  %12 = dma.done [#allocation4], 16
  %13 = sfence
  $region1: #{tpu_custom_call.1} parent=0
    #allocation6 [shape = 'u8[8192]{0}', space=vmem, size = 0x2000, scoped, tag = 'output window, operand 0']
    #allocation7 [shape = 's32[2]{0}', space=sflag, size = 0x8, scoped, tag = 'scoped memory for tpu_custom_call.1']
    %14 = vsyncpa [#allocation7], 0
    %s15 = scalar_lea.sflag [#allocation7], 1
    %16 = vsyncpa %s15, 0
    loop: start=0, step=1, limit=4
    $region2: #{tpu_custom_call.1} parent=1 // loop_pre_header
      _
    $region3: #{tpu_custom_call.1} parent=1 // loop_header
      %s18 = sphi 0, %s22
      %p19 = scmp.ge.s32.totalorder %s18, 4
      %s25 = sphi 0, %s37
      %s26 = sphi 0, %s33
      %s27 = sphi 0, %s25
      %s28 = sphi 0, %s26
      %s29 = sphi 0, %s27
      %s30 = sphi 0, %s28
      %s40 = sphi 0, %s42
      %s43 = sphi 0, %s40
      %s44 = sphi 0, %s43
      %s60 = sphi 0, %s44
      %s68 = sphi 0, %s70
      %s71 = sphi 0, %s68
      %s72 = sphi 0, %s71
      %s88 = sphi 0, %s72
    $region4: #{tpu_custom_call.1} parent=1 // loop_header_branch
      %21 = sbr.rel (%p19) target = $region8
    $region5: #{tpu_custom_call.1} parent=1 // loop_body
      %s23 = ssub.s32 %s18, 1
      %s24 = ssub.s32 %s18, 2
      %s31 = sadd.s32 1, %s26
      %p32 = scmp.ge.s32.totalorder %s31, 1
      %s33 = scalar_select %p32, 0, %s31
      %s34 = sadd.s32 1, %s25
      %s35 = scalar_select %p32, %s34, %s25
      %p36 = scmp.ge.s32.totalorder %s35, 2
      %s37 = scalar_select %p36, 0, %s35
      %s38 = ssub.s32 %s26, %s33
      %p39 = scmp.eq.s32.totalorder %s38, 0
      %s41 = sadd.s32 %s40, 1
      %s42 = scalar_select %p39, %s40, %s41
      %p45 = pneg %p39
      %p46 = scmp.eq.s32.totalorder %s18, 1
      %p47 = por %p45, %p46
      %p48 = scmp.ne.s32.totalorder %s40, %s43
      %p49 = scmp.eq.s32.totalorder %s18, 0
      %p50 = por %p48, %p49
      %p51 = scmp.ne.s32.totalorder %s40, %s43
      %p52 = scmp.eq.s32.totalorder %s23, 1
      %p53 = por %p51, %p52
      %p54 = scmp.ne.s32.totalorder %s43, %s44
      %p55 = scmp.eq.s32.totalorder %s23, 0
      %p56 = por %p54, %p55
      %p57 = scmp.ne.s32.totalorder %s43, %s44
      %p58 = scmp.eq.s32.totalorder %s24, 1
      %p59 = por %p57, %p58
      %p61 = scmp.ne.s32.totalorder %s44, %s60
      %p62 = scmp.eq.s32.totalorder %s24, 0
      %p63 = por %p61, %p62
      %s64 = ssub.s32 %s25, %s37
      %s65 = ssub.s32 %s26, %s33
      %s66 = sor.u32 %s64, %s65
      %p67 = scmp.eq.s32.totalorder %s66, 0
      %s69 = sadd.s32 %s68, 1
      %s70 = scalar_select %p67, %s68, %s69
      %p73 = pneg %p67
      %p74 = scmp.eq.s32.totalorder %s18, 1
      %p75 = por %p73, %p74
      %p76 = scmp.ne.s32.totalorder %s68, %s71
      %p77 = scmp.eq.s32.totalorder %s18, 0
      %p78 = por %p76, %p77
      %p79 = scmp.ne.s32.totalorder %s68, %s71
      %p80 = scmp.eq.s32.totalorder %s23, 1
      %p81 = por %p79, %p80
      %p82 = scmp.ne.s32.totalorder %s71, %s72
      %p83 = scmp.eq.s32.totalorder %s23, 0
      %p84 = por %p82, %p83
      %p85 = scmp.ne.s32.totalorder %s71, %s72
      %p86 = scmp.eq.s32.totalorder %s24, 1
      %p87 = por %p85, %p86
      %p89 = scmp.ne.s32.totalorder %s72, %s88
      %p90 = scmp.eq.s32.totalorder %s24, 0
      %p91 = por %p89, %p90
      %p92 = scmp.le.s32.totalorder 1, %s18
      %p93 = scmp.lt.s32.totalorder %s18, 3
      %p94 = pnand %p92, %p93
      %p95 = pneg %p94
      // Predicated region
      $region9: #{tpu_custom_call.1} parent=5 // pred_check
        _
      $region10: #{tpu_custom_call.1} parent=5 // pred_check_branch
        %97 = sbr.rel (%p94) target = $region12
      $region11: #{tpu_custom_call.1} parent=5 // pred_region
        %s98 = ssub.s32 %s18, 1
        // Predicated region
        $region13: #{tpu_custom_call.1} parent=11 // pred_check
          %p99 = pneg %p56
        $region14: #{tpu_custom_call.1} parent=11 // pred_check_branch
          %101 = sbr.rel (%p99) target = $region16
        $region15: #{tpu_custom_call.1} parent=11 // pred_region
          %p102 = scmp.lt.s32.totalorder %s28, 0
          %s103 = scalar_select %p102, %s28, 0
          %s104 = smul.addr %s103, 8
          %s105 = scalar_lea.vmem %s2, %s104
        $region16: #{tpu_custom_call.1} parent=11 // pred_fallthru
          _
      $region12: #{tpu_custom_call.1} parent=5 // pred_fallthru
        _
      %p106 = scmp.lt.s32.totalorder %s18, 2
      // Predicated region
      $region17: #{tpu_custom_call.1} parent=5 // pred_check
        %p107 = pneg %p106
      $region18: #{tpu_custom_call.1} parent=5 // pred_check_branch
        %109 = sbr.rel (%p107) target = $region20
      $region19: #{tpu_custom_call.1} parent=5 // pred_region
        _
      $region20: #{tpu_custom_call.1} parent=5 // pred_fallthru
        _
      %p110 = scmp.le.s32.totalorder 1, %s18
      %p111 = scmp.lt.s32.totalorder %s18, 3
      %p112 = pnand %p110, %p111
      %p113 = pneg %p112
      // Predicated region
      $region21: #{tpu_custom_call.1} parent=5 // pred_check
        _
      $region22: #{tpu_custom_call.1} parent=5 // pred_check_branch
        %115 = sbr.rel (%p112) target = $region24
      $region23: #{tpu_custom_call.1} parent=5 // pred_region
        %s116 = ssub.s32 %s18, 1
        %p117 = scmp.lt.s32.totalorder %s28, 0
        %s118 = scalar_select %p117, %s28, 0
        %s119 = smul.addr %s118, 8
        %s120 = scalar_lea.vmem %s2, %s119
        %p121 = pneg %p56
        %p122 = pneg %p53
        %p123 = pneg %p84
        %p124 = pneg %p81
        %s125 = sand.u32 %s71, 1
        %s126 = scalar_lea.sflag [#allocation7], %s125
        %s127 = sand.u32 %s71, 1
        %s128 = smul.addr %s127, 8
        %s129 = scalar_lea.vmem [#allocation6], %s128
        %p130 = scmp.lt.s32.totalorder %s28, 0
        %s131 = scalar_select %p130, %s28, 0
        %s132 = smul.addr %s131, 8
        %s133 = scalar_lea.vmem %s2, %s132
        %s134 = smul.u32 %s27, 8
        %s135 = smul.u32 %s28, 8
        %s136 = sadd.s32 %s134, %s135
        %s137 = sld [smem:[#allocation5 + %s136]]
        %s138 = scalar_lea.vmem %s1, %s137
        %p140 = scmp.lt.u32.totalorder 1, 8
        %p141 = pneg %p140
        // Predicated region
        $region25: #{tpu_custom_call.1} parent=23 // pred_check
          _
        $region26: #{tpu_custom_call.1} parent=23 // pred_check_branch
          %143 = sbr.rel (%p140) target = $region28
        $region27: #{tpu_custom_call.1} parent=23 // pred_region
          %s158 = sand.u32 1, 7
          %p159 = scmp.eq.s32.totalorder %s158, 0
          %p160 = pneg %p159
          // Predicated region
          $region40: #{tpu_custom_call.1} parent=27 // pred_check
            _
          $region41: #{tpu_custom_call.1} parent=27 // pred_check_branch
            %162 = sbr.rel (%p159) target = $region43
          $region42: #{tpu_custom_call.1} parent=27 // pred_region
            %s163 = sand.u32 1, 7
            %s164 = ssub.s32 1, %s163
            %s165 = scalar_lea.vmem %s138, %s164
            %s166 = ssub.s32 1, %s163
            %s167 = scalar_lea.vmem [#allocation2], %s166
            %s168 = sshllo.u32 0, %s163
            loop: start=0, step=1, limit=1
            $region44: #{tpu_custom_call.1} parent=42 // loop_pre_header
              _
            $region45: #{tpu_custom_call.1} parent=42 // loop_header
              %s170 = sphi 0, %s174
              %p171 = scmp.ge.s32.totalorder %s170, 1
              %s175 = sphi %s165, %s165
              %s176 = sphi %s167, %s167
            $region46: #{tpu_custom_call.1} parent=42 // loop_header_branch
              %173 = sbr.rel (%p171) target = $region50
            $region47: #{tpu_custom_call.1} parent=42 // loop_body
              %v177 = vld [vmem:[%s175] sm:%s168]
              %178 = vst [vmem:[%s176] sm:%s168] %v177
            $region48: #{tpu_custom_call.1} parent=42 // loop_footer
              %s174 = sadd.s32 1, %s170
            $region49: #{tpu_custom_call.1} parent=42 // loop_footer_branch
              %169 = sbr.rel target = $region45
            $region50: #{tpu_custom_call.1} parent=42 // loop_exit
              _
          $region43: #{tpu_custom_call.1} parent=27 // pred_fallthru
            _
        $region28: #{tpu_custom_call.1} parent=23 // pred_fallthru
          _
        // Predicated region
        $region29: #{tpu_custom_call.1} parent=23 // pred_check
          %p144 = pneg %p140
        $region30: #{tpu_custom_call.1} parent=23 // pred_check_branch
          %146 = sbr.rel (%p144) target = $region32
        $region31: #{tpu_custom_call.1} parent=23 // pred_region
          %s147 = sshllo.u32 0, 1
          loop: start=0, step=1, limit=1
          $region33: #{tpu_custom_call.1} parent=31 // loop_pre_header
            _
          $region34: #{tpu_custom_call.1} parent=31 // loop_header
            %s149 = sphi 0, %s153
            %p150 = scmp.ge.s32.totalorder %s149, 1
            %s154 = sphi %s138, %s138
            %s155 = sphi [#allocation2], [#allocation2]
          $region35: #{tpu_custom_call.1} parent=31 // loop_header_branch
            %152 = sbr.rel (%p150) target = $region39
          $region36: #{tpu_custom_call.1} parent=31 // loop_body
            %v156 = vld [vmem:[%s154] sm:%s147]
            %157 = vst [vmem:[%s155] sm:%s147] %v156
          $region37: #{tpu_custom_call.1} parent=31 // loop_footer
            %s153 = sadd.s32 1, %s149
          $region38: #{tpu_custom_call.1} parent=31 // loop_footer_branch
            %148 = sbr.rel target = $region34
          $region39: #{tpu_custom_call.1} parent=31 // loop_exit
            _
        $region32: #{tpu_custom_call.1} parent=23 // pred_fallthru
          _
        // Predicated region
        $region51: #{tpu_custom_call.1} parent=23 // pred_check
          _
        $region52: #{tpu_custom_call.1} parent=23 // pred_check_branch
          %181 = sbr.rel (0) target = $region54
        $region53: #{tpu_custom_call.1} parent=23 // pred_region
          %182 = vsyncadd [#allocation3], 16
        $region54: #{tpu_custom_call.1} parent=23 // pred_fallthru
          _
        %s183 = sadd.s32 %s136, 1
        %s184 = sld [smem:[#allocation5 + %s183]]
        %s185 = scalar_lea.vmem %s1, %s184
        %s186 = scalar_lea.vmem [#allocation2], 1
        %p188 = scmp.lt.u32.totalorder 1, 8
        %p189 = pneg %p188
        // Predicated region
        $region55: #{tpu_custom_call.1} parent=23 // pred_check
          _
        $region56: #{tpu_custom_call.1} parent=23 // pred_check_branch
          %191 = sbr.rel (%p188) target = $region58
        $region57: #{tpu_custom_call.1} parent=23 // pred_region
          %s206 = sand.u32 1, 7
          %p207 = scmp.eq.s32.totalorder %s206, 0
          %p208 = pneg %p207
          // Predicated region
          $region70: #{tpu_custom_call.1} parent=57 // pred_check
            _
          $region71: #{tpu_custom_call.1} parent=57 // pred_check_branch
            %210 = sbr.rel (%p207) target = $region73
          $region72: #{tpu_custom_call.1} parent=57 // pred_region
            %s211 = sand.u32 1, 7
            %s212 = ssub.s32 1, %s211
            %s213 = scalar_lea.vmem %s185, %s212
            %s214 = ssub.s32 1, %s211
            %s215 = scalar_lea.vmem %s186, %s214 [#allocation2]
            %s216 = sshllo.u32 0, %s211
            loop: start=0, step=1, limit=1
            $region74: #{tpu_custom_call.1} parent=72 // loop_pre_header
              _
            $region75: #{tpu_custom_call.1} parent=72 // loop_header
              %s218 = sphi 0, %s222
              %p219 = scmp.ge.s32.totalorder %s218, 1
              %s223 = sphi %s213, %s213
              %s224 = sphi %s215, %s215
            $region76: #{tpu_custom_call.1} parent=72 // loop_header_branch
              %221 = sbr.rel (%p219) target = $region80
            $region77: #{tpu_custom_call.1} parent=72 // loop_body
              %v225 = vld [vmem:[%s223] sm:%s216]
              %226 = vst [vmem:[%s224] sm:%s216] %v225
            $region78: #{tpu_custom_call.1} parent=72 // loop_footer
              %s222 = sadd.s32 1, %s218
            $region79: #{tpu_custom_call.1} parent=72 // loop_footer_branch
              %217 = sbr.rel target = $region75
            $region80: #{tpu_custom_call.1} parent=72 // loop_exit
              _
          $region73: #{tpu_custom_call.1} parent=57 // pred_fallthru
            _
        $region58: #{tpu_custom_call.1} parent=23 // pred_fallthru
          _
        // Predicated region
        $region59: #{tpu_custom_call.1} parent=23 // pred_check
          %p192 = pneg %p188
        $region60: #{tpu_custom_call.1} parent=23 // pred_check_branch
          %194 = sbr.rel (%p192) target = $region62
        $region61: #{tpu_custom_call.1} parent=23 // pred_region
          %s195 = sshllo.u32 0, 1
          loop: start=0, step=1, limit=1
          $region63: #{tpu_custom_call.1} parent=61 // loop_pre_header
            _
          $region64: #{tpu_custom_call.1} parent=61 // loop_header
            %s197 = sphi 0, %s201
            %p198 = scmp.ge.s32.totalorder %s197, 1
            %s202 = sphi %s185, %s185
            %s203 = sphi %s186, %s186
          $region65: #{tpu_custom_call.1} parent=61 // loop_header_branch
            %200 = sbr.rel (%p198) target = $region69
          $region66: #{tpu_custom_call.1} parent=61 // loop_body
            %v204 = vld [vmem:[%s202] sm:%s195]
            %205 = vst [vmem:[%s203] sm:%s195] %v204
          $region67: #{tpu_custom_call.1} parent=61 // loop_footer
            %s201 = sadd.s32 1, %s197
          $region68: #{tpu_custom_call.1} parent=61 // loop_footer_branch
            %196 = sbr.rel target = $region64
          $region69: #{tpu_custom_call.1} parent=61 // loop_exit
            _
        $region62: #{tpu_custom_call.1} parent=23 // pred_fallthru
          _
        // Predicated region
        $region81: #{tpu_custom_call.1} parent=23 // pred_check
          _
        $region82: #{tpu_custom_call.1} parent=23 // pred_check_branch
          %229 = sbr.rel (0) target = $region84
        $region83: #{tpu_custom_call.1} parent=23 // pred_region
          %230 = vsyncadd [#allocation3], 16
        $region84: #{tpu_custom_call.1} parent=23 // pred_fallthru
          _
        %s231 = sadd.s32 %s136, 2
        %s232 = sld [smem:[#allocation5 + %s231]]
        %s233 = scalar_lea.vmem %s1, %s232
        %s234 = scalar_lea.vmem [#allocation2], 2
        %p236 = scmp.lt.u32.totalorder 1, 8
        %p237 = pneg %p236
        // Predicated region
        $region85: #{tpu_custom_call.1} parent=23 // pred_check
          _
        $region86: #{tpu_custom_call.1} parent=23 // pred_check_branch
          %239 = sbr.rel (%p236) target = $region88
        $region87: #{tpu_custom_call.1} parent=23 // pred_region
          %s254 = sand.u32 1, 7
          %p255 = scmp.eq.s32.totalorder %s254, 0
          %p256 = pneg %p255
          // Predicated region
          $region100: #{tpu_custom_call.1} parent=87 // pred_check
            _
          $region101: #{tpu_custom_call.1} parent=87 // pred_check_branch
            %258 = sbr.rel (%p255) target = $region103
          $region102: #{tpu_custom_call.1} parent=87 // pred_region
            %s259 = sand.u32 1, 7
            %s260 = ssub.s32 1, %s259
            %s261 = scalar_lea.vmem %s233, %s260
            %s262 = ssub.s32 1, %s259
            %s263 = scalar_lea.vmem %s234, %s262 [#allocation2]
            %s264 = sshllo.u32 0, %s259
            loop: start=0, step=1, limit=1
            $region104: #{tpu_custom_call.1} parent=102 // loop_pre_header
              _
            $region105: #{tpu_custom_call.1} parent=102 // loop_header
              %s266 = sphi 0, %s270
              %p267 = scmp.ge.s32.totalorder %s266, 1
              %s271 = sphi %s261, %s261
              %s272 = sphi %s263, %s263
            $region106: #{tpu_custom_call.1} parent=102 // loop_header_branch
              %269 = sbr.rel (%p267) target = $region110
            $region107: #{tpu_custom_call.1} parent=102 // loop_body
              %v273 = vld [vmem:[%s271] sm:%s264]
              %274 = vst [vmem:[%s272] sm:%s264] %v273
            $region108: #{tpu_custom_call.1} parent=102 // loop_footer
              %s270 = sadd.s32 1, %s266
            $region109: #{tpu_custom_call.1} parent=102 // loop_footer_branch
              %265 = sbr.rel target = $region105
            $region110: #{tpu_custom_call.1} parent=102 // loop_exit
              _
          $region103: #{tpu_custom_call.1} parent=87 // pred_fallthru
            _
        $region88: #{tpu_custom_call.1} parent=23 // pred_fallthru
          _
        // Predicated region
        $region89: #{tpu_custom_call.1} parent=23 // pred_check
          %p240 = pneg %p236
        $region90: #{tpu_custom_call.1} parent=23 // pred_check_branch
          %242 = sbr.rel (%p240) target = $region92
        $region91: #{tpu_custom_call.1} parent=23 // pred_region
          %s243 = sshllo.u32 0, 1
          loop: start=0, step=1, limit=1
          $region93: #{tpu_custom_call.1} parent=91 // loop_pre_header
            _
          $region94: #{tpu_custom_call.1} parent=91 // loop_header
            %s245 = sphi 0, %s249
            %p246 = scmp.ge.s32.totalorder %s245, 1
            %s250 = sphi %s233, %s233
            %s251 = sphi %s234, %s234
          $region95: #{tpu_custom_call.1} parent=91 // loop_header_branch
            %248 = sbr.rel (%p246) target = $region99
          $region96: #{tpu_custom_call.1} parent=91 // loop_body
            %v252 = vld [vmem:[%s250] sm:%s243]
            %253 = vst [vmem:[%s251] sm:%s243] %v252
          $region97: #{tpu_custom_call.1} parent=91 // loop_footer
            %s249 = sadd.s32 1, %s245
          $region98: #{tpu_custom_call.1} parent=91 // loop_footer_branch
            %244 = sbr.rel target = $region94
          $region99: #{tpu_custom_call.1} parent=91 // loop_exit
            _
        $region92: #{tpu_custom_call.1} parent=23 // pred_fallthru
          _
        // Predicated region
        $region111: #{tpu_custom_call.1} parent=23 // pred_check
          _
        $region112: #{tpu_custom_call.1} parent=23 // pred_check_branch
          %277 = sbr.rel (0) target = $region114
        $region113: #{tpu_custom_call.1} parent=23 // pred_region
          %278 = vsyncadd [#allocation3], 16
        $region114: #{tpu_custom_call.1} parent=23 // pred_fallthru
          _
        %s279 = sadd.s32 %s136, 3
        %s280 = sld [smem:[#allocation5 + %s279]]
        %s281 = scalar_lea.vmem %s1, %s280
        %s282 = scalar_lea.vmem [#allocation2], 3
        %p284 = scmp.lt.u32.totalorder 1, 8
        %p285 = pneg %p284
        // Predicated region
        $region115: #{tpu_custom_call.1} parent=23 // pred_check
          _
        $region116: #{tpu_custom_call.1} parent=23 // pred_check_branch
          %287 = sbr.rel (%p284) target = $region118
        $region117: #{tpu_custom_call.1} parent=23 // pred_region
          %s302 = sand.u32 1, 7
          %p303 = scmp.eq.s32.totalorder %s302, 0
          %p304 = pneg %p303
          // Predicated region
          $region130: #{tpu_custom_call.1} parent=117 // pred_check
            _
          $region131: #{tpu_custom_call.1} parent=117 // pred_check_branch
            %306 = sbr.rel (%p303) target = $region133
          $region132: #{tpu_custom_call.1} parent=117 // pred_region
            %s307 = sand.u32 1, 7
            %s308 = ssub.s32 1, %s307
            %s309 = scalar_lea.vmem %s281, %s308
            %s310 = ssub.s32 1, %s307
            %s311 = scalar_lea.vmem %s282, %s310 [#allocation2]
            %s312 = sshllo.u32 0, %s307
            loop: start=0, step=1, limit=1
            $region134: #{tpu_custom_call.1} parent=132 // loop_pre_header
              _
            $region135: #{tpu_custom_call.1} parent=132 // loop_header
              %s314 = sphi 0, %s318
              %p315 = scmp.ge.s32.totalorder %s314, 1
              %s319 = sphi %s309, %s309
              %s320 = sphi %s311, %s311
            $region136: #{tpu_custom_call.1} parent=132 // loop_header_branch
              %317 = sbr.rel (%p315) target = $region140
            $region137: #{tpu_custom_call.1} parent=132 // loop_body
              %v321 = vld [vmem:[%s319] sm:%s312]
              %322 = vst [vmem:[%s320] sm:%s312] %v321
            $region138: #{tpu_custom_call.1} parent=132 // loop_footer
              %s318 = sadd.s32 1, %s314
            $region139: #{tpu_custom_call.1} parent=132 // loop_footer_branch
              %313 = sbr.rel target = $region135
            $region140: #{tpu_custom_call.1} parent=132 // loop_exit
              _
          $region133: #{tpu_custom_call.1} parent=117 // pred_fallthru
            _
        $region118: #{tpu_custom_call.1} parent=23 // pred_fallthru
          _
        // Predicated region
        $region119: #{tpu_custom_call.1} parent=23 // pred_check
          %p288 = pneg %p284
        $region120: #{tpu_custom_call.1} parent=23 // pred_check_branch
          %290 = sbr.rel (%p288) target = $region122
        $region121: #{tpu_custom_call.1} parent=23 // pred_region
          %s291 = sshllo.u32 0, 1
          loop: start=0, step=1, limit=1
          $region123: #{tpu_custom_call.1} parent=121 // loop_pre_header
            _
          $region124: #{tpu_custom_call.1} parent=121 // loop_header
            %s293 = sphi 0, %s297
            %p294 = scmp.ge.s32.totalorder %s293, 1
            %s298 = sphi %s281, %s281
            %s299 = sphi %s282, %s282
          $region125: #{tpu_custom_call.1} parent=121 // loop_header_branch
            %296 = sbr.rel (%p294) target = $region129
          $region126: #{tpu_custom_call.1} parent=121 // loop_body
            %v300 = vld [vmem:[%s298] sm:%s291]
            %301 = vst [vmem:[%s299] sm:%s291] %v300
          $region127: #{tpu_custom_call.1} parent=121 // loop_footer
            %s297 = sadd.s32 1, %s293
          $region128: #{tpu_custom_call.1} parent=121 // loop_footer_branch
            %292 = sbr.rel target = $region124
          $region129: #{tpu_custom_call.1} parent=121 // loop_exit
            _
        $region122: #{tpu_custom_call.1} parent=23 // pred_fallthru
          _
        // Predicated region
        $region141: #{tpu_custom_call.1} parent=23 // pred_check
          _
        $region142: #{tpu_custom_call.1} parent=23 // pred_check_branch
          %325 = sbr.rel (0) target = $region144
        $region143: #{tpu_custom_call.1} parent=23 // pred_region
          %326 = vsyncadd [#allocation3], 16
        $region144: #{tpu_custom_call.1} parent=23 // pred_fallthru
          _
        %s327 = sadd.s32 %s136, 4
        %s328 = sld [smem:[#allocation5 + %s327]]
        %s329 = scalar_lea.vmem %s1, %s328
        %s330 = scalar_lea.vmem [#allocation2], 4
        %p332 = scmp.lt.u32.totalorder 1, 8
        %p333 = pneg %p332
        // Predicated region
        $region145: #{tpu_custom_call.1} parent=23 // pred_check
          _
        $region146: #{tpu_custom_call.1} parent=23 // pred_check_branch
          %335 = sbr.rel (%p332) target = $region148
        $region147: #{tpu_custom_call.1} parent=23 // pred_region
          %s350 = sand.u32 1, 7
          %p351 = scmp.eq.s32.totalorder %s350, 0
          %p352 = pneg %p351
          // Predicated region
          $region160: #{tpu_custom_call.1} parent=147 // pred_check
            _
          $region161: #{tpu_custom_call.1} parent=147 // pred_check_branch
            %354 = sbr.rel (%p351) target = $region163
          $region162: #{tpu_custom_call.1} parent=147 // pred_region
            %s355 = sand.u32 1, 7
            %s356 = ssub.s32 1, %s355
            %s357 = scalar_lea.vmem %s329, %s356
            %s358 = ssub.s32 1, %s355
            %s359 = scalar_lea.vmem %s330, %s358 [#allocation2]
            %s360 = sshllo.u32 0, %s355
            loop: start=0, step=1, limit=1
            $region164: #{tpu_custom_call.1} parent=162 // loop_pre_header
              _
            $region165: #{tpu_custom_call.1} parent=162 // loop_header
              %s362 = sphi 0, %s366
              %p363 = scmp.ge.s32.totalorder %s362, 1
              %s367 = sphi %s357, %s357
              %s368 = sphi %s359, %s359
            $region166: #{tpu_custom_call.1} parent=162 // loop_header_branch
              %365 = sbr.rel (%p363) target = $region170
            $region167: #{tpu_custom_call.1} parent=162 // loop_body
              %v369 = vld [vmem:[%s367] sm:%s360]
              %370 = vst [vmem:[%s368] sm:%s360] %v369
            $region168: #{tpu_custom_call.1} parent=162 // loop_footer
              %s366 = sadd.s32 1, %s362
            $region169: #{tpu_custom_call.1} parent=162 // loop_footer_branch
              %361 = sbr.rel target = $region165
            $region170: #{tpu_custom_call.1} parent=162 // loop_exit
              _
          $region163: #{tpu_custom_call.1} parent=147 // pred_fallthru
            _
        $region148: #{tpu_custom_call.1} parent=23 // pred_fallthru
          _
        // Predicated region
        $region149: #{tpu_custom_call.1} parent=23 // pred_check
          %p336 = pneg %p332
        $region150: #{tpu_custom_call.1} parent=23 // pred_check_branch
          %338 = sbr.rel (%p336) target = $region152
        $region151: #{tpu_custom_call.1} parent=23 // pred_region
          %s339 = sshllo.u32 0, 1
          loop: start=0, step=1, limit=1
          $region153: #{tpu_custom_call.1} parent=151 // loop_pre_header
            _
          $region154: #{tpu_custom_call.1} parent=151 // loop_header
            %s341 = sphi 0, %s345
            %p342 = scmp.ge.s32.totalorder %s341, 1
            %s346 = sphi %s329, %s329
            %s347 = sphi %s330, %s330
          $region155: #{tpu_custom_call.1} parent=151 // loop_header_branch
            %344 = sbr.rel (%p342) target = $region159
          $region156: #{tpu_custom_call.1} parent=151 // loop_body
            %v348 = vld [vmem:[%s346] sm:%s339]
            %349 = vst [vmem:[%s347] sm:%s339] %v348
          $region157: #{tpu_custom_call.1} parent=151 // loop_footer
            %s345 = sadd.s32 1, %s341
          $region158: #{tpu_custom_call.1} parent=151 // loop_footer_branch
            %340 = sbr.rel target = $region154
          $region159: #{tpu_custom_call.1} parent=151 // loop_exit
            _
        $region152: #{tpu_custom_call.1} parent=23 // pred_fallthru
          _
        // Predicated region
        $region171: #{tpu_custom_call.1} parent=23 // pred_check
          _
        $region172: #{tpu_custom_call.1} parent=23 // pred_check_branch
          %373 = sbr.rel (0) target = $region174
        $region173: #{tpu_custom_call.1} parent=23 // pred_region
          %374 = vsyncadd [#allocation3], 16
        $region174: #{tpu_custom_call.1} parent=23 // pred_fallthru
          _
        %s375 = sadd.s32 %s136, 5
        %s376 = sld [smem:[#allocation5 + %s375]]
        %s377 = scalar_lea.vmem %s1, %s376
        %s378 = scalar_lea.vmem [#allocation2], 5
        %p380 = scmp.lt.u32.totalorder 1, 8
        %p381 = pneg %p380
        // Predicated region
        $region175: #{tpu_custom_call.1} parent=23 // pred_check
          _
        $region176: #{tpu_custom_call.1} parent=23 // pred_check_branch
          %383 = sbr.rel (%p380) target = $region178
        $region177: #{tpu_custom_call.1} parent=23 // pred_region
          %s398 = sand.u32 1, 7
          %p399 = scmp.eq.s32.totalorder %s398, 0
          %p400 = pneg %p399
          // Predicated region
          $region190: #{tpu_custom_call.1} parent=177 // pred_check
            _
          $region191: #{tpu_custom_call.1} parent=177 // pred_check_branch
            %402 = sbr.rel (%p399) target = $region193
          $region192: #{tpu_custom_call.1} parent=177 // pred_region
            %s403 = sand.u32 1, 7
            %s404 = ssub.s32 1, %s403
            %s405 = scalar_lea.vmem %s377, %s404
            %s406 = ssub.s32 1, %s403
            %s407 = scalar_lea.vmem %s378, %s406 [#allocation2]
            %s408 = sshllo.u32 0, %s403
            loop: start=0, step=1, limit=1
            $region194: #{tpu_custom_call.1} parent=192 // loop_pre_header
              _
            $region195: #{tpu_custom_call.1} parent=192 // loop_header
              %s410 = sphi 0, %s414
              %p411 = scmp.ge.s32.totalorder %s410, 1
              %s415 = sphi %s405, %s405
              %s416 = sphi %s407, %s407
            $region196: #{tpu_custom_call.1} parent=192 // loop_header_branch
              %413 = sbr.rel (%p411) target = $region200
            $region197: #{tpu_custom_call.1} parent=192 // loop_body
              %v417 = vld [vmem:[%s415] sm:%s408]
              %418 = vst [vmem:[%s416] sm:%s408] %v417
            $region198: #{tpu_custom_call.1} parent=192 // loop_footer
              %s414 = sadd.s32 1, %s410
            $region199: #{tpu_custom_call.1} parent=192 // loop_footer_branch
              %409 = sbr.rel target = $region195
            $region200: #{tpu_custom_call.1} parent=192 // loop_exit
              _
          $region193: #{tpu_custom_call.1} parent=177 // pred_fallthru
            _
        $region178: #{tpu_custom_call.1} parent=23 // pred_fallthru
          _
        // Predicated region
        $region179: #{tpu_custom_call.1} parent=23 // pred_check
          %p384 = pneg %p380
        $region180: #{tpu_custom_call.1} parent=23 // pred_check_branch
          %386 = sbr.rel (%p384) target = $region182
        $region181: #{tpu_custom_call.1} parent=23 // pred_region
          %s387 = sshllo.u32 0, 1
          loop: start=0, step=1, limit=1
          $region183: #{tpu_custom_call.1} parent=181 // loop_pre_header
            _
          $region184: #{tpu_custom_call.1} parent=181 // loop_header
            %s389 = sphi 0, %s393
            %p390 = scmp.ge.s32.totalorder %s389, 1
            %s394 = sphi %s377, %s377
            %s395 = sphi %s378, %s378
          $region185: #{tpu_custom_call.1} parent=181 // loop_header_branch
            %392 = sbr.rel (%p390) target = $region189
          $region186: #{tpu_custom_call.1} parent=181 // loop_body
            %v396 = vld [vmem:[%s394] sm:%s387]
            %397 = vst [vmem:[%s395] sm:%s387] %v396
          $region187: #{tpu_custom_call.1} parent=181 // loop_footer
            %s393 = sadd.s32 1, %s389
          $region188: #{tpu_custom_call.1} parent=181 // loop_footer_branch
            %388 = sbr.rel target = $region184
          $region189: #{tpu_custom_call.1} parent=181 // loop_exit
            _
        $region182: #{tpu_custom_call.1} parent=23 // pred_fallthru
          _
        // Predicated region
        $region201: #{tpu_custom_call.1} parent=23 // pred_check
          _
        $region202: #{tpu_custom_call.1} parent=23 // pred_check_branch
          %421 = sbr.rel (0) target = $region204
        $region203: #{tpu_custom_call.1} parent=23 // pred_region
          %422 = vsyncadd [#allocation3], 16
        $region204: #{tpu_custom_call.1} parent=23 // pred_fallthru
          _
        %s423 = sadd.s32 %s136, 6
        %s424 = sld [smem:[#allocation5 + %s423]]
        %s425 = scalar_lea.vmem %s1, %s424
        %s426 = scalar_lea.vmem [#allocation2], 6
        %p428 = scmp.lt.u32.totalorder 1, 8
        %p429 = pneg %p428
        // Predicated region
        $region205: #{tpu_custom_call.1} parent=23 // pred_check
          _
        $region206: #{tpu_custom_call.1} parent=23 // pred_check_branch
          %431 = sbr.rel (%p428) target = $region208
        $region207: #{tpu_custom_call.1} parent=23 // pred_region
          %s446 = sand.u32 1, 7
          %p447 = scmp.eq.s32.totalorder %s446, 0
          %p448 = pneg %p447
          // Predicated region
          $region220: #{tpu_custom_call.1} parent=207 // pred_check
            _
          $region221: #{tpu_custom_call.1} parent=207 // pred_check_branch
            %450 = sbr.rel (%p447) target = $region223
          $region222: #{tpu_custom_call.1} parent=207 // pred_region
            %s451 = sand.u32 1, 7
            %s452 = ssub.s32 1, %s451
            %s453 = scalar_lea.vmem %s425, %s452
            %s454 = ssub.s32 1, %s451
            %s455 = scalar_lea.vmem %s426, %s454 [#allocation2]
            %s456 = sshllo.u32 0, %s451
            loop: start=0, step=1, limit=1
            $region224: #{tpu_custom_call.1} parent=222 // loop_pre_header
              _
            $region225: #{tpu_custom_call.1} parent=222 // loop_header
              %s458 = sphi 0, %s462
              %p459 = scmp.ge.s32.totalorder %s458, 1
              %s463 = sphi %s453, %s453
              %s464 = sphi %s455, %s455
            $region226: #{tpu_custom_call.1} parent=222 // loop_header_branch
              %461 = sbr.rel (%p459) target = $region230
            $region227: #{tpu_custom_call.1} parent=222 // loop_body
              %v465 = vld [vmem:[%s463] sm:%s456]
              %466 = vst [vmem:[%s464] sm:%s456] %v465
            $region228: #{tpu_custom_call.1} parent=222 // loop_footer
              %s462 = sadd.s32 1, %s458
            $region229: #{tpu_custom_call.1} parent=222 // loop_footer_branch
              %457 = sbr.rel target = $region225
            $region230: #{tpu_custom_call.1} parent=222 // loop_exit
              _
          $region223: #{tpu_custom_call.1} parent=207 // pred_fallthru
            _
        $region208: #{tpu_custom_call.1} parent=23 // pred_fallthru
          _
        // Predicated region
        $region209: #{tpu_custom_call.1} parent=23 // pred_check
          %p432 = pneg %p428
        $region210: #{tpu_custom_call.1} parent=23 // pred_check_branch
          %434 = sbr.rel (%p432) target = $region212
        $region211: #{tpu_custom_call.1} parent=23 // pred_region
          %s435 = sshllo.u32 0, 1
          loop: start=0, step=1, limit=1
          $region213: #{tpu_custom_call.1} parent=211 // loop_pre_header
            _
          $region214: #{tpu_custom_call.1} parent=211 // loop_header
            %s437 = sphi 0, %s441
            %p438 = scmp.ge.s32.totalorder %s437, 1
            %s442 = sphi %s425, %s425
            %s443 = sphi %s426, %s426
          $region215: #{tpu_custom_call.1} parent=211 // loop_header_branch
            %440 = sbr.rel (%p438) target = $region219
          $region216: #{tpu_custom_call.1} parent=211 // loop_body
            %v444 = vld [vmem:[%s442] sm:%s435]
            %445 = vst [vmem:[%s443] sm:%s435] %v444
          $region217: #{tpu_custom_call.1} parent=211 // loop_footer
            %s441 = sadd.s32 1, %s437
          $region218: #{tpu_custom_call.1} parent=211 // loop_footer_branch
            %436 = sbr.rel target = $region214
          $region219: #{tpu_custom_call.1} parent=211 // loop_exit
            _
        $region212: #{tpu_custom_call.1} parent=23 // pred_fallthru
          _
        // Predicated region
        $region231: #{tpu_custom_call.1} parent=23 // pred_check
          _
        $region232: #{tpu_custom_call.1} parent=23 // pred_check_branch
          %469 = sbr.rel (0) target = $region234
        $region233: #{tpu_custom_call.1} parent=23 // pred_region
          %470 = vsyncadd [#allocation3], 16
        $region234: #{tpu_custom_call.1} parent=23 // pred_fallthru
          _
        %s471 = sadd.s32 %s136, 7
        %s472 = sld [smem:[#allocation5 + %s471]]
        %s473 = scalar_lea.vmem %s1, %s472
        %s474 = scalar_lea.vmem [#allocation2], 7
        %p476 = scmp.lt.u32.totalorder 1, 8
        %p477 = pneg %p476
        // Predicated region
        $region235: #{tpu_custom_call.1} parent=23 // pred_check
          _
        $region236: #{tpu_custom_call.1} parent=23 // pred_check_branch
          %479 = sbr.rel (%p476) target = $region238
        $region237: #{tpu_custom_call.1} parent=23 // pred_region
          %s494 = sand.u32 1, 7
          %p495 = scmp.eq.s32.totalorder %s494, 0
          %p496 = pneg %p495
          // Predicated region
          $region250: #{tpu_custom_call.1} parent=237 // pred_check
            _
          $region251: #{tpu_custom_call.1} parent=237 // pred_check_branch
            %498 = sbr.rel (%p495) target = $region253
          $region252: #{tpu_custom_call.1} parent=237 // pred_region
            %s499 = sand.u32 1, 7
            %s500 = ssub.s32 1, %s499
            %s501 = scalar_lea.vmem %s473, %s500
            %s502 = ssub.s32 1, %s499
            %s503 = scalar_lea.vmem %s474, %s502 [#allocation2]
            %s504 = sshllo.u32 0, %s499
            loop: start=0, step=1, limit=1
            $region254: #{tpu_custom_call.1} parent=252 // loop_pre_header
              _
            $region255: #{tpu_custom_call.1} parent=252 // loop_header
              %s506 = sphi 0, %s510
              %p507 = scmp.ge.s32.totalorder %s506, 1
              %s511 = sphi %s501, %s501
              %s512 = sphi %s503, %s503
            $region256: #{tpu_custom_call.1} parent=252 // loop_header_branch
              %509 = sbr.rel (%p507) target = $region260
            $region257: #{tpu_custom_call.1} parent=252 // loop_body
              %v513 = vld [vmem:[%s511] sm:%s504]
              %514 = vst [vmem:[%s512] sm:%s504] %v513
            $region258: #{tpu_custom_call.1} parent=252 // loop_footer
              %s510 = sadd.s32 1, %s506
            $region259: #{tpu_custom_call.1} parent=252 // loop_footer_branch
              %505 = sbr.rel target = $region255
            $region260: #{tpu_custom_call.1} parent=252 // loop_exit
              _
          $region253: #{tpu_custom_call.1} parent=237 // pred_fallthru
            _
        $region238: #{tpu_custom_call.1} parent=23 // pred_fallthru
          _
        // Predicated region
        $region239: #{tpu_custom_call.1} parent=23 // pred_check
          %p480 = pneg %p476
        $region240: #{tpu_custom_call.1} parent=23 // pred_check_branch
          %482 = sbr.rel (%p480) target = $region242
        $region241: #{tpu_custom_call.1} parent=23 // pred_region
          %s483 = sshllo.u32 0, 1
          loop: start=0, step=1, limit=1
          $region243: #{tpu_custom_call.1} parent=241 // loop_pre_header
            _
          $region244: #{tpu_custom_call.1} parent=241 // loop_header
            %s485 = sphi 0, %s489
            %p486 = scmp.ge.s32.totalorder %s485, 1
            %s490 = sphi %s473, %s473
            %s491 = sphi %s474, %s474
          $region245: #{tpu_custom_call.1} parent=241 // loop_header_branch
            %488 = sbr.rel (%p486) target = $region249
          $region246: #{tpu_custom_call.1} parent=241 // loop_body
            %v492 = vld [vmem:[%s490] sm:%s483]
            %493 = vst [vmem:[%s491] sm:%s483] %v492
          $region247: #{tpu_custom_call.1} parent=241 // loop_footer
            %s489 = sadd.s32 1, %s485
          $region248: #{tpu_custom_call.1} parent=241 // loop_footer_branch
            %484 = sbr.rel target = $region244
          $region249: #{tpu_custom_call.1} parent=241 // loop_exit
            _
        $region242: #{tpu_custom_call.1} parent=23 // pred_fallthru
          _
        // Predicated region
        $region261: #{tpu_custom_call.1} parent=23 // pred_check
          _
        $region262: #{tpu_custom_call.1} parent=23 // pred_check_branch
          %517 = sbr.rel (0) target = $region264
        $region263: #{tpu_custom_call.1} parent=23 // pred_region
          %518 = vsyncadd [#allocation3], 16
        $region264: #{tpu_custom_call.1} parent=23 // pred_fallthru
          _
        %520 = dma.done [#allocation3], 16
        %522 = dma.done [#allocation3], 16
        %524 = dma.done [#allocation3], 16
        %526 = dma.done [#allocation3], 16
        %528 = dma.done [#allocation3], 16
        %530 = dma.done [#allocation3], 16
        %532 = dma.done [#allocation3], 16
        %534 = dma.done [#allocation3], 16
        %v535 = vld [vmem:[#allocation2] sm:$0xff]
        %v536 = vld [vmem:[%s133] sm:$0xff]
        %v537 = vadd.f32 %v535, %v536
        %vm538 = vcmask 261120
        %539 = vst.msk [vmem:[%s129] sm:$0xff] %vm538, %v537
        %s540 = sand.u32 %s71, 1
        %s541 = scalar_lea.sflag [#allocation7], %s540
        %s542 = sand.u32 %s71, 1
        %s543 = smul.addr %s542, 8
        %s544 = scalar_lea.vmem [#allocation6], %s543
        // Predicated region
        $region265: #{tpu_custom_call.1} parent=23 // pred_check
          %p545 = pneg %p81
        $region266: #{tpu_custom_call.1} parent=23 // pred_check_branch
          %547 = sbr.rel (%p545) target = $region268
        $region267: #{tpu_custom_call.1} parent=23 // pred_region
          %s549 = ssub.s32 128, 128
          %550 = vsyncadd %s541, %s549
          %s551 = sadd.s32 %s28, %s27
          %s552 = smul.addr %s551, 128
          %s553 = scalar_lea.hbm %s3, %s552
          %s555 = sshll.u32 %s544, 4
          %s556 = int_to_ptr.vmem [resolvable:$true] %s555
          %558 = dma.vmem_to_hbm [thread:$0]  %s556, 128, %s553, %s541
        $region268: #{tpu_custom_call.1} parent=23 // pred_fallthru
          _
      $region24: #{tpu_custom_call.1} parent=5 // pred_fallthru
        _
      %p559 = scmp.le.s32.totalorder 2, %s18
      // Predicated region
      $region269: #{tpu_custom_call.1} parent=5 // pred_check
        %p560 = pneg %p559
      $region270: #{tpu_custom_call.1} parent=5 // pred_check_branch
        %562 = sbr.rel (%p560) target = $region272
      $region271: #{tpu_custom_call.1} parent=5 // pred_region
        %s563 = ssub.s32 %s18, 2
        // Predicated region
        $region273: #{tpu_custom_call.1} parent=271 // pred_check
          %p564 = pneg %p87
        $region274: #{tpu_custom_call.1} parent=271 // pred_check_branch
          %566 = sbr.rel (%p564) target = $region276
        $region275: #{tpu_custom_call.1} parent=271 // pred_region
          %s567 = sand.u32 %s72, 1
          %s568 = scalar_lea.sflag [#allocation7], %s567
          %s569 = sand.u32 %s72, 1
          %s570 = smul.addr %s569, 8
          %s571 = scalar_lea.vmem [#allocation6], %s570
          %572 = dma.done %s568, 128
        $region276: #{tpu_custom_call.1} parent=271 // pred_fallthru
          _
      $region272: #{tpu_custom_call.1} parent=5 // pred_fallthru
        _
    $region6: #{tpu_custom_call.1} parent=1 // loop_footer
      %s22 = sadd.s32 1, %s18
    $region7: #{tpu_custom_call.1} parent=1 // loop_footer_branch
      %17 = sbr.rel target = $region3
    $region8: #{tpu_custom_call.1} parent=1 // loop_exit
      _
    %573 = vsyncpa [#allocation7], 1
    %s574 = scalar_lea.sflag [#allocation7], 1
    %575 = vsyncpa %s574, 1
  %576 = vsyncmov [#allocation3]
  %s577 = vpop.sfrf %576
  %p578 = scmp.eq.s32.totalorder %s577, 0
  %p579 = pneg %p578
  %581 = shalt.err (%p579)

</llo_original>
